<compile_context>
chip_gen: v5e
topology: v5e:2x2
jax: 0.10.0
libtpu: 0.0.40
codegen_flags: <defaults>
</compile_context>

<pallas_src>
import jax
import jax.numpy as jnp
from jax.experimental import pallas as pl
from jax.experimental.pallas import tpu as pltpu

C_IN = 64
C_OUT = 22
MAX_TILE_M = 2048  # columns of the (C_IN, M) activation slab per grid step


def _round_up(x, m):
    return ((x + m - 1) // m) * m


def _conv1x1_kernel(x_ref, w_ref, b_ref, o_ref):
    # x_ref: (C_IN, TILE_M), w_ref: (C_OUT, C_IN), b_ref: (C_OUT, 1)
    # o_ref: (C_OUT, TILE_M)  -- lane-dense output block.
    acc = jnp.dot(w_ref[...], x_ref[...], preferred_element_type=jnp.float32)
    o_ref[...] = (acc + b_ref[...]).astype(o_ref.dtype)


def conv1x1(x_nchw, weight, bias):
    """1x1 conv, stride 1, pad 0.

    x_nchw: (N, C_IN, H, W) float32
    weight: (C_OUT, C_IN, 1, 1) float32  (PyTorch Conv2d layout)
    bias:   (C_OUT,) float32
    returns (N, C_OUT, H, W) float32
    """
    N, C, H, W = x_nchw.shape
    assert C == C_IN

    M = N * H * W
    # NCHW -> CNHW -> (C_IN, M). Only the two major axes swap; the minor
    # (lane) axis is untouched, and (N, H, W) -> M is a free reshape.
    x_cm = jnp.transpose(x_nchw, (1, 0, 2, 3)).reshape(C_IN, M)

    # Lane-dim tile: large multiple of 128, capped so small inputs don't
    # allocate an oversized block.  No explicit padding: the grid uses cdiv
    # and Pallas masks the ragged last block on writeback (columns are
    # independent, so garbage in the padded region never contaminates valid
    # output columns).
    tile_m = min(MAX_TILE_M, _round_up(M, 128))
    grid_m = pl.cdiv(M, tile_m)

    w_mat = weight.reshape(C_OUT, C_IN)   # (22, 64)
    b_mat = bias.reshape(C_OUT, 1)        # (22, 1)

    out_cm = pl.pallas_call(
        _conv1x1_kernel,
        out_shape=jax.ShapeDtypeStruct((C_OUT, M), x_cm.dtype),
        grid_spec=pltpu.PrefetchScalarGridSpec(
            num_scalar_prefetch=0,
            grid=(grid_m,),
            in_specs=[
                # Activations: lane-dense (64, TILE_M) blocks streamed over M.
                pl.BlockSpec((C_IN, tile_m), lambda i: (0, i)),
                # Weight / bias: constant index map -> resident in VMEM.
                pl.BlockSpec((C_OUT, C_IN), lambda i: (0, 0)),
                pl.BlockSpec((C_OUT, 1), lambda i: (0, 0)),
            ],
            out_specs=pl.BlockSpec((C_OUT, tile_m), lambda i: (0, i)),
        ),
        compiler_params=pltpu.CompilerParams(
            dimension_semantics=("parallel",)),
    )(x_cm, w_mat, b_mat)

    # (C_OUT, M) -> (C_OUT, N, H, W) -> NCHW (again only major axes move).
    return jnp.transpose(out_cm.reshape(C_OUT, N, H, W), (1, 0, 2, 3))


if __name__ == "__main__":
    key = jax.random.PRNGKey(0)
    kx, kw, kb = jax.random.split(key, 3)

    # Deterministic synthetic parameters (shapes match nn.Conv2d(64, 22, 1, 1, 0)).
    bound = 1.0 / (C_IN ** 0.5)  # PyTorch-style uniform init bound for 1x1 kernel
    weight = jax.random.uniform(kw, (C_OUT, C_IN, 1, 1), jnp.float32, -bound, bound)
    bias = jax.random.uniform(kb, (C_OUT,), jnp.float32, -bound, bound)

    # Small example input consistent with the module: N=2, C=64, H=W=16.
    x = jax.random.normal(kx, (2, C_IN, 16, 16), jnp.float32)

    y = conv1x1(x, weight, bias)
    jax.block_until_ready(y)

    # Reference check in plain JAX (same math: per-pixel matmul + bias).
    ref = jnp.einsum("nchw,oc->nohw", x, weight.reshape(C_OUT, C_IN)) \
        + bias[None, :, None, None]
    assert y.shape == (2, C_OUT, 16, 16)
    assert jnp.allclose(y, ref, atol=1e-4, rtol=1e-4)

    print("KERNEL_OK")
</pallas_src>

<mosaic_0001>
module attributes {stable_mosaic.version = 11 : i64} {
  func.func @_conv1x1_kernel(%arg0: i32, %arg1: memref<64x512xf32, #tpu.memory_space<vmem>>, %arg2: memref<22x64xf32, #tpu.memory_space<vmem>>, %arg3: memref<22x1xf32, #tpu.memory_space<vmem>>, %arg4: memref<22x512xf32, #tpu.memory_space<vmem>>) attributes {dimension_semantics = [#tpu.dimension_semantics<parallel>], iteration_bounds = array<i64: 1>, scalar_prefetch = 0 : i64, scratch_operands = 0 : i64, tpu.core_type = #tpu.core_type<tc>, window_params = [{transform_indices = @transform_0, window_bounds = array<i64: 64, 512>}, {pipeline_mode = #tpu.pipeline_mode<synchronous>, transform_indices = @transform_1, window_bounds = array<i64: 22, 64>}, {pipeline_mode = #tpu.pipeline_mode<synchronous>, transform_indices = @transform_2, window_bounds = array<i64: 22, 1>}, {transform_indices = @transform_3, window_bounds = array<i64: 22, 512>}]} {
    %c0 = arith.constant 0 : index
    %c0_0 = arith.constant 0 : index
    %0 = vector.load %arg2[%c0, %c0_0] : memref<22x64xf32, #tpu.memory_space<vmem>>, vector<22x64xf32>
    %c0_1 = arith.constant 0 : index
    %c0_2 = arith.constant 0 : index
    %1 = vector.load %arg1[%c0_1, %c0_2] : memref<64x512xf32, #tpu.memory_space<vmem>>, vector<64x512xf32>
    %cst = arith.constant dense<0.000000e+00> : vector<22x512xf32>
    %2 = tpu.matmul %0, %1, %cst {dimension_numbers = #tpu.dot_dimension_numbers<[1], [0], [0], [1], [0, 0, 1, 1], [], []>} : vector<22x64xf32>, vector<64x512xf32>, vector<22x512xf32> -> vector<22x512xf32>
    %c0_3 = arith.constant 0 : index
    %c0_4 = arith.constant 0 : index
    %3 = vector.load %arg3[%c0_3, %c0_4] : memref<22x1xf32, #tpu.memory_space<vmem>>, vector<22x1xf32>
    %4 = vector.broadcast %3 : vector<22x1xf32> to vector<22x512xf32>
    %5 = arith.addf %2, %4 : vector<22x512xf32>
    %c0_5 = arith.constant 0 : index
    %c0_6 = arith.constant 0 : index
    %6 = vector.load %arg4[%c0_5, %c0_6] : memref<22x512xf32, #tpu.memory_space<vmem>>, vector<22x512xf32>
    tpu.vector_store %arg4[%c0_5, %c0_6], %5 {strides = array<i32>} : memref<22x512xf32, #tpu.memory_space<vmem>>, vector<22x512xf32>,
    return
  }
  func.func @transform_0(%arg0: i32) -> (i32, i32) {
    %c0_i32 = arith.constant 0 : i32
    %c0_i32_0 = arith.constant 0 : i32
    return %c0_i32, %arg0 : i32, i32
  }
  func.func @transform_1(%arg0: i32) -> (i32, i32) {
    %c0_i32 = arith.constant 0 : i32
    %c0_i32_0 = arith.constant 0 : i32
    %c0_i32_1 = arith.constant 0 : i32
    return %c0_i32, %c0_i32_0 : i32, i32
  }
  func.func @transform_2(%arg0: i32) -> (i32, i32) {
    %c0_i32 = arith.constant 0 : i32
    %c0_i32_0 = arith.constant 0 : i32
    %c0_i32_1 = arith.constant 0 : i32
    return %c0_i32, %c0_i32_0 : i32, i32
  }
  func.func @transform_3(%arg0: i32) -> (i32, i32) {
    %c0_i32 = arith.constant 0 : i32
    %c0_i32_0 = arith.constant 0 : i32
    return %c0_i32, %arg0 : i32, i32
  }
}

</mosaic_0001>

<llo_original>
// kernel: tpu_custom_call.1
$region0: #{tpu_custom_call.1}
  #allocation0 [shape = 'u32[]', space=smem, size = 0x4, offset = 0x4, fixed_abs, tag = 'smem constant byte address 0x4 - core index']
  #allocation1 [shape = 'u32[72,128]{1,0:T(1,128)}', space=vmem, size = 0x9000, scoped, tag = 'internal scratch']
  %s0 = inlined_call_operand.hbm [shape: f32[64,512], index: 0, kind: input, shape index: {}]
  %s1 = inlined_call_operand.vmem [shape: f32[22,64], index: 1, kind: input, shape index: {}]
  %s2 = inlined_call_operand.vmem [shape: f32[22,1], index: 2, kind: input, shape index: {}]
  %s3 = inlined_call_operand.hbm [shape: f32[22,512], index: 3, kind: output, shape index: {}]
  %s4 = sld [smem:[#allocation0]]
  $region26: #{tpu_custom_call.1} parent=0
    _
  %s6 = ssub.s32 1, %s4
  %s7 = scalar_select 0, %s6, %s4
  $region1: #{tpu_custom_call.1} parent=0
    #allocation2 [shape = 'u8[131072]{0}', space=vmem, size = 0x20000, scoped, tag = 'input window, operand 0, single buffered']
    #allocation3 [shape = 's32[1]{0}', space=sflag, size = 0x4, scoped, tag = 'scoped memory for tpu_custom_call.1']
    #allocation4 [shape = 's32[1]{0}', space=sflag, size = 0x4, scoped, tag = 'scoped memory for tpu_custom_call.1']
    #allocation5 [shape = 'u8[49152]{0}', space=vmem, size = 0xc000, scoped, tag = 'output window, operand 0, single buffered']
    %8 = vsyncpa [#allocation3], 0
    %9 = vsyncpa [#allocation4], 0
    // Predicated region
    $region2: #{tpu_custom_call.1} parent=1 // pred_check
      _
    $region3: #{tpu_custom_call.1} parent=1 // pred_check_branch
      %11 = sbr.rel (0) target = $region5
    $region4: #{tpu_custom_call.1} parent=1 // pred_region
      %13 = vsyncadd [#allocation3], 0
      %s14 = sshll.u32 %s0, 4
      %s15 = int_to_ptr.hbm [resolvable:$true] %s14
      %s16 = sshll.u32 [#allocation2], 4
      %s17 = int_to_ptr.vmem [resolvable:$true] %s16
      %22 = dma.hbm_to_vmem [thread:$0]  %s15, 4096, %s17, [#allocation3], 512, 512, 32
    $region5: #{tpu_custom_call.1} parent=1 // pred_fallthru
      _
    // Predicated region
    $region6: #{tpu_custom_call.1} parent=1 // pred_check
      _
    $region7: #{tpu_custom_call.1} parent=1 // pred_check_branch
      %24 = sbr.rel (0) target = $region9
    $region8: #{tpu_custom_call.1} parent=1 // pred_region
      _
    $region9: #{tpu_custom_call.1} parent=1 // pred_fallthru
      _
    // Predicated region
    $region10: #{tpu_custom_call.1} parent=1 // pred_check
      _
    $region11: #{tpu_custom_call.1} parent=1 // pred_check_branch
      %26 = sbr.rel (0) target = $region13
    $region12: #{tpu_custom_call.1} parent=1 // pred_region
      _
    $region13: #{tpu_custom_call.1} parent=1 // pred_fallthru
      _
    // Predicated region
    $region14: #{tpu_custom_call.1} parent=1 // pred_check
      _
    $region15: #{tpu_custom_call.1} parent=1 // pred_check_branch
      %28 = sbr.rel (0) target = $region17
    $region16: #{tpu_custom_call.1} parent=1 // pred_region
      %30 = dma.done [#allocation3], 4096
    $region17: #{tpu_custom_call.1} parent=1 // pred_fallthru
      _
    %v31 = vld [vmem:[%s1] sm:$0xff]
    %v32 = vld [vmem:[%s1 + $0x8] sm:$0xff]
    %v33 = vld [vmem:[%s1 + $0x10] sm:$0x3f]
    %v34 = vld [vmem:[#allocation2] sm:$0xff]
    %v35 = vld [vmem:[#allocation2 + $0x8] sm:$0xff]
    %v36 = vld [vmem:[#allocation2 + $0x10] sm:$0xff]
    %v37 = vld [vmem:[#allocation2 + $0x18] sm:$0xff]
    %v38 = vld [vmem:[#allocation2 + $0x20] sm:$0xff]
    %v39 = vld [vmem:[#allocation2 + $0x28] sm:$0xff]
    %v40 = vld [vmem:[#allocation2 + $0x30] sm:$0xff]
    %v41 = vld [vmem:[#allocation2 + $0x38] sm:$0xff]
    %v42 = vld [vmem:[#allocation2 + $0x40] sm:$0xff]
    %v43 = vld [vmem:[#allocation2 + $0x48] sm:$0xff]
    %v44 = vld [vmem:[#allocation2 + $0x50] sm:$0xff]
    %v45 = vld [vmem:[#allocation2 + $0x58] sm:$0xff]
    %v46 = vld [vmem:[#allocation2 + $0x60] sm:$0xff]
    %v47 = vld [vmem:[#allocation2 + $0x68] sm:$0xff]
    %v48 = vld [vmem:[#allocation2 + $0x70] sm:$0xff]
    %v49 = vld [vmem:[#allocation2 + $0x78] sm:$0xff]
    %v50 = vld [vmem:[#allocation2 + $0x80] sm:$0xff]
    %v51 = vld [vmem:[#allocation2 + $0x88] sm:$0xff]
    %v52 = vld [vmem:[#allocation2 + $0x90] sm:$0xff]
    %v53 = vld [vmem:[#allocation2 + $0x98] sm:$0xff]
    %v54 = vld [vmem:[#allocation2 + $0xa0] sm:$0xff]
    %v55 = vld [vmem:[#allocation2 + $0xa8] sm:$0xff]
    %v56 = vld [vmem:[#allocation2 + $0xb0] sm:$0xff]
    %v57 = vld [vmem:[#allocation2 + $0xb8] sm:$0xff]
    %v58 = vld [vmem:[#allocation2 + $0xc0] sm:$0xff]
    %v59 = vld [vmem:[#allocation2 + $0xc8] sm:$0xff]
    %v60 = vld [vmem:[#allocation2 + $0xd0] sm:$0xff]
    %v61 = vld [vmem:[#allocation2 + $0xd8] sm:$0xff]
    %v62 = vld [vmem:[#allocation2 + $0xe0] sm:$0xff]
    %v63 = vld [vmem:[#allocation2 + $0xe8] sm:$0xff]
    %v64 = vld [vmem:[#allocation2 + $0xf0] sm:$0xff]
    %v65 = vld [vmem:[#allocation2 + $0xf8] sm:$0xff]
    %v66 = vld [vmem:[%s2] sm:$0xff]
    %v67 = vld [vmem:[%s2 + $0x8] sm:$0xff]
    %v68 = vld [vmem:[%s2 + $0x10] sm:$0x3f]
    %70 = vset.pattern.permute.xlu0 0
    %71 = vperm.xlu0 %70, %v66
    %v72 = vpop.permute.xlu0 %71
    %75 = vset.pattern.permute.xlu0 0
    %76 = vperm.xlu0 %75, %v67
    %v77 = vpop.permute.xlu0 %76
    %80 = vset.pattern.permute.xlu0 0
    %81 = vperm.xlu0 %80, %v68
    %v82 = vpop.permute.xlu0 %81
    %vm84 = vcmask 523264
    %v86 = vsel %vm84, %v31, 0
    %v89 = vsel %vm84, %v32, 0
    %v92 = vsel %vm84, %v33, 0
    %94 = vmatpush.msra.mxu0 0.0
    %95 = vmatpush.msra.mxu0 0.0
    %96 = vmatpush.msra.mxu0 0.0
    %97 = vmatpush.msra.mxu0 0.0
    %98 = vmatpush.msra.mxu0 0.0
    %99 = vmatpush.msra.mxu0 0.0
    %100 = vmatpush.msra.mxu0 0.0
    %101 = vmatpush.msra.mxu0 0.0
    %102 = vmatpush.msra.mxu0 %v62
    %103 = vmatpush.msra.mxu0 %v58
    %104 = vmatpush.msra.mxu0 %v54
    %105 = vmatpush.msra.mxu0 %v50
    %106 = vmatpush.msra.mxu0 %v46
    %107 = vmatpush.msra.mxu0 %v42
    %108 = vmatpush.msra.mxu0 %v38
    %109 = vmatpush.msra.mxu0 %v34
    %110 = vmatmul.f32.gmra.mxu0 %v86
    %v111 = vpop.f32.mrf.mxu0
    %v112 = vadd.f32 %v72, %v111
    %113 = vmatmul.f32.gmra.mxu0 %v89
    %v114 = vpop.f32.mrf.mxu0
    %v115 = vadd.f32 %v77, %v114
    %116 = vmatmul.f32.gmra.mxu0 %v92
    %v117 = vpop.f32.mrf.mxu0
    %v118 = vadd.f32 %v82, %v117
    %119 = vdwg.mxu0
    %120 = vmatpush.msra.mxu0 0.0
    %121 = vmatpush.msra.mxu0 0.0
    %122 = vmatpush.msra.mxu0 0.0
    %123 = vmatpush.msra.mxu0 0.0
    %124 = vmatpush.msra.mxu0 0.0
    %125 = vmatpush.msra.mxu0 0.0
    %126 = vmatpush.msra.mxu0 0.0
    %127 = vmatpush.msra.mxu0 0.0
    %128 = vmatpush.msra.mxu0 %v63
    %129 = vmatpush.msra.mxu0 %v59
    %130 = vmatpush.msra.mxu0 %v55
    %131 = vmatpush.msra.mxu0 %v51
    %132 = vmatpush.msra.mxu0 %v47
    %133 = vmatpush.msra.mxu0 %v43
    %134 = vmatpush.msra.mxu0 %v39
    %135 = vmatpush.msra.mxu0 %v35
    %136 = vmatmul.f32.gmra.mxu0 %v86
    %v137 = vpop.f32.mrf.mxu0
    %v138 = vadd.f32 %v72, %v137
    %139 = vmatmul.f32.gmra.mxu0 %v89
    %v140 = vpop.f32.mrf.mxu0
    %v141 = vadd.f32 %v77, %v140
    %142 = vmatmul.f32.gmra.mxu0 %v92
    %v143 = vpop.f32.mrf.mxu0
    %v144 = vadd.f32 %v82, %v143
    %145 = vdwg.mxu0
    %146 = vmatpush.msra.mxu0 0.0
    %147 = vmatpush.msra.mxu0 0.0
    %148 = vmatpush.msra.mxu0 0.0
    %149 = vmatpush.msra.mxu0 0.0
    %150 = vmatpush.msra.mxu0 0.0
    %151 = vmatpush.msra.mxu0 0.0
    %152 = vmatpush.msra.mxu0 0.0
    %153 = vmatpush.msra.mxu0 0.0
    %154 = vmatpush.msra.mxu0 %v64
    %155 = vmatpush.msra.mxu0 %v60
    %156 = vmatpush.msra.mxu0 %v56
    %157 = vmatpush.msra.mxu0 %v52
    %158 = vmatpush.msra.mxu0 %v48
    %159 = vmatpush.msra.mxu0 %v44
    %160 = vmatpush.msra.mxu0 %v40
    %161 = vmatpush.msra.mxu0 %v36
    %162 = vmatmul.f32.gmra.mxu0 %v86
    %v163 = vpop.f32.mrf.mxu0
    %v164 = vadd.f32 %v72, %v163
    %165 = vmatmul.f32.gmra.mxu0 %v89
    %v166 = vpop.f32.mrf.mxu0
    %v167 = vadd.f32 %v77, %v166
    %168 = vmatmul.f32.gmra.mxu0 %v92
    %v169 = vpop.f32.mrf.mxu0
    %v170 = vadd.f32 %v82, %v169
    %171 = vdwg.mxu0
    %172 = vmatpush.msra.mxu0 0.0
    %173 = vmatpush.msra.mxu0 0.0
    %174 = vmatpush.msra.mxu0 0.0
    %175 = vmatpush.msra.mxu0 0.0
    %176 = vmatpush.msra.mxu0 0.0
    %177 = vmatpush.msra.mxu0 0.0
    %178 = vmatpush.msra.mxu0 0.0
    %179 = vmatpush.msra.mxu0 0.0
    %180 = vmatpush.msra.mxu0 %v65
    %181 = vmatpush.msra.mxu0 %v61
    %182 = vmatpush.msra.mxu0 %v57
    %183 = vmatpush.msra.mxu0 %v53
    %184 = vmatpush.msra.mxu0 %v49
    %185 = vmatpush.msra.mxu0 %v45
    %186 = vmatpush.msra.mxu0 %v41
    %187 = vmatpush.msra.mxu0 %v37
    %188 = vmatmul.f32.gmra.mxu0 %v86
    %v189 = vpop.f32.mrf.mxu0
    %v190 = vadd.f32 %v72, %v189
    %191 = vmatmul.f32.gmra.mxu0 %v89
    %v192 = vpop.f32.mrf.mxu0
    %v193 = vadd.f32 %v77, %v192
    %194 = vmatmul.f32.gmra.mxu0 %v92
    %v195 = vpop.f32.mrf.mxu0
    %v196 = vadd.f32 %v82, %v195
    %197 = vdwg.mxu0
    %198 = vst [vmem:[#allocation5] sm:$0xff] %v112
    %199 = vst [vmem:[#allocation5 + $0x8] sm:$0xff] %v138
    %200 = vst [vmem:[#allocation5 + $0x10] sm:$0xff] %v164
    %201 = vst [vmem:[#allocation5 + $0x18] sm:$0xff] %v190
    %202 = vst [vmem:[#allocation5 + $0x20] sm:$0xff] %v115
    %203 = vst [vmem:[#allocation5 + $0x28] sm:$0xff] %v141
    %204 = vst [vmem:[#allocation5 + $0x30] sm:$0xff] %v167
    %205 = vst [vmem:[#allocation5 + $0x38] sm:$0xff] %v193
    %206 = vst [vmem:[#allocation5 + $0x40] sm:$0x3f] %v118
    %207 = vst [vmem:[#allocation5 + $0x48] sm:$0x3f] %v144
    %208 = vst [vmem:[#allocation5 + $0x50] sm:$0x3f] %v170
    %209 = vst [vmem:[#allocation5 + $0x58] sm:$0x3f] %v196
    // Predicated region
    $region18: #{tpu_custom_call.1} parent=1 // pred_check
      _
    $region19: #{tpu_custom_call.1} parent=1 // pred_check_branch
      %211 = sbr.rel (0) target = $region21
    $region20: #{tpu_custom_call.1} parent=1 // pred_region
      %213 = vsyncadd [#allocation4], 0
      %s214 = sshll.u32 [#allocation5], 4
      %s215 = int_to_ptr.vmem [resolvable:$true] %s214
      %s216 = sshll.u32 %s3, 4
      %s217 = int_to_ptr.hbm [resolvable:$true] %s216
      %222 = dma.vmem_to_hbm [thread:$0]  %s215, 1536, %s217, [#allocation4], 512, 512, 32
    $region21: #{tpu_custom_call.1} parent=1 // pred_fallthru
      _
    // Predicated region
    $region22: #{tpu_custom_call.1} parent=1 // pred_check
      _
    $region23: #{tpu_custom_call.1} parent=1 // pred_check_branch
      %224 = sbr.rel (0) target = $region25
    $region24: #{tpu_custom_call.1} parent=1 // pred_region
      %226 = dma.done [#allocation4], 1536
    $region25: #{tpu_custom_call.1} parent=1 // pred_fallthru
      _
    %227 = vsyncpa [#allocation3], 1
    %228 = vsyncpa [#allocation4], 1

</llo_original>
